<compile_context>
chip_gen: v7x
topology: tpu7x:2x2x1
jax: 0.10.0
libtpu: 0.0.40
codegen_flags: <defaults>
</compile_context>

<pallas_src>
import functools
import math

import jax
import jax.numpy as jnp
from jax import lax
from jax.experimental import pallas as pl
from jax.experimental.pallas import tpu as pltpu


def _label_smoothing_kl_kernel(pred_ref, target_ref, out_ref, acc_ref, *,
                               smoothing, classes, total_n, tile_n, entropy_const):
    # pred_ref: (tile_n, C) VMEM block; target_ref: (tile_n, 1) int32 VMEM block
    # out_ref:  (1, 1) f32 SMEM (resident, written on last step)
    # acc_ref:  (1,)  f32 SMEM scratch accumulator
    pid = pl.program_id(0)

    @pl.when(pid == 0)
    def _():
        acc_ref[0] = jnp.float32(0.0)

    # cast in-kernel (inputs may be bf16 in HBM; keep all arithmetic in f32)
    logits = pred_ref[...].astype(jnp.float32)           # (tile_n, C)
    tn, c = logits.shape

    # per-row log-softmax statistics (reused for the whole loss; no full logp tensor)
    m = jnp.max(logits, axis=-1, keepdims=True)                               # (tile_n, 1)
    lse = jnp.log(jnp.sum(jnp.exp(logits - m), axis=-1, keepdims=True))       # (tile_n, 1)
    sum_logits = jnp.sum(logits, axis=-1, keepdims=True)                      # (tile_n, 1)
    # sum_j logp[n, j] = sum_j logits[n, j] - C * (m_n + lse_n)
    sum_logp = sum_logits - jnp.float32(c) * (m + lse)

    # logits[n, t_n] via one-hot masked row-sum (no scatter/gather on TPU)
    col = lax.broadcasted_iota(jnp.int32, (tn, c), 1)
    tgt = target_ref[...]                                                     # (tile_n, 1)
    tgt_logit = jnp.sum(jnp.where(col == tgt, logits, 0.0), axis=-1, keepdims=True)
    tgt_logp = tgt_logit - m - lse

    confidence = jnp.float32(1.0 - smoothing)
    off = jnp.float32(smoothing / (classes - 1))
    # -(true_dist . logp) per row; entropy term is constant-folded (entropy_const)
    row_term = -(off * sum_logp + (confidence - off) * tgt_logp)              # (tile_n, 1)

    # mask rows past the true batch size (partial last tile)
    row = lax.broadcasted_iota(jnp.int32, (tn, 1), 0)
    valid = (pid * tile_n + row) < total_n
    row_term = jnp.where(valid, row_term, 0.0)

    acc_ref[0] += jnp.sum(row_term)

    @pl.when(pid == pl.num_programs(0) - 1)
    def _():
        out_ref[0, 0] = jnp.float32(entropy_const) + acc_ref[0] / jnp.float32(total_n)


def label_smoothing_loss(pred, target, *, classes, smoothing=0.1, tile_n=256):
    """pred: (N, C) float logits (any float dtype), target: (N,) int labels -> scalar loss."""
    n, c = pred.shape
    assert c == classes
    target2d = target.astype(jnp.int32).reshape(n, 1)

    # Tile over the batch dimension; keep blocks (8,128)-legal:
    #   second-minor block dim is either == N (single tile) or a multiple of 8.
    if n <= tile_n:
        tile_n = n
    else:
        assert tile_n % 8 == 0, "tile_n must be a multiple of 8"
    num_blocks = pl.cdiv(n, tile_n)

    # Constant-fold the entropy term sum_j true_dist*log(true_dist) per row.
    # Also makes smoothing == 0.0 well-defined (0 * log 0 := 0).
    confidence = 1.0 - smoothing
    off = smoothing / (classes - 1)
    entropy_const = 0.0
    if confidence > 0.0:
        entropy_const += confidence * math.log(confidence)
    if off > 0.0:
        entropy_const += (classes - 1) * off * math.log(off)

    kernel = functools.partial(
        _label_smoothing_kl_kernel,
        smoothing=smoothing, classes=classes,
        total_n=n, tile_n=tile_n, entropy_const=entropy_const,
    )

    # NOTE: for very small C (< 128 lanes) the vregs are under-filled; folding batch
    # rows into lanes would cut vector-op count further but complicates the per-row
    # reductions, so it is left as layout plumbing for a future revision.
    out = pl.pallas_call(
        kernel,
        out_shape=jax.ShapeDtypeStruct((1, 1), jnp.float32),
        grid_spec=pltpu.PrefetchScalarGridSpec(
            num_scalar_prefetch=0,
            grid=(num_blocks,),
            in_specs=[
                pl.BlockSpec((tile_n, c), lambda i: (i, 0)),   # logits tile (native dtype)
                pl.BlockSpec((tile_n, 1), lambda i: (i, 0)),   # target tile
            ],
            out_specs=pl.BlockSpec((1, 1), lambda i: (0, 0),
                                   memory_space=pltpu.MemorySpace.SMEM),
            scratch_shapes=[pltpu.SMEM((1,), jnp.float32)],
        ),
        compiler_params=pltpu.CompilerParams(
            dimension_semantics=("arbitrary",),          # accumulator axis
            vmem_limit_bytes=32 * 1024 * 1024,
        ),
    )(pred, target2d)
    return out[0, 0]


def _reference_loss(pred, target, *, classes, smoothing=0.1):
    confidence = 1.0 - smoothing
    logp = jax.nn.log_softmax(pred.astype(jnp.float32), axis=-1)
    n, c = pred.shape
    true_dist = jnp.full((n, c), smoothing / (classes - 1), dtype=jnp.float32)
    true_dist = true_dist.at[jnp.arange(n), target].set(confidence)
    return jnp.sum(true_dist * (jnp.log(true_dist) - logp)) / n


if __name__ == "__main__":
    key = jax.random.PRNGKey(0)
    k1, k2 = jax.random.split(key)

    N, C = 16, 32  # small shapes: batch=16, classes=32; tile_n=8 -> 2 grid steps
    pred = jax.random.normal(k1, (N, C), dtype=jnp.float32)
    target = jax.random.randint(k2, (N,), 0, C, dtype=jnp.int32)

    loss = label_smoothing_loss(pred, target, classes=C, smoothing=0.1, tile_n=8)
    loss = jax.block_until_ready(loss)

    ref = _reference_loss(pred, target, classes=C, smoothing=0.1)
    assert jnp.allclose(loss, ref, rtol=1e-5, atol=1e-5), (loss, ref)

    print("KERNEL_OK")
</pallas_src>

<mosaic_0001>
module attributes {stable_mosaic.version = 11 : i64} {
  func.func @_label_smoothing_kl_kernel(%arg0: i32, %arg1: memref<8x32xf32, #tpu.memory_space<vmem>>, %arg2: memref<8x1xi32, #tpu.memory_space<vmem>>, %arg3: memref<1x1xf32, #tpu.memory_space<smem>>, %arg4: memref<1xf32, #tpu.memory_space<smem>>) attributes {dimension_semantics = [#tpu.dimension_semantics<arbitrary>], iteration_bounds = array<i64: 2>, scalar_prefetch = 0 : i64, scratch_operands = 1 : i64, tpu.core_type = #tpu.core_type<tc>, window_params = [{transform_indices = @transform_0, window_bounds = array<i64: 8, 32>}, {transform_indices = @transform_1, window_bounds = array<i64: 8, 1>}, {transform_indices = @transform_2, window_bounds = array<i64: 1, 1>}]} {
    %c0_i32 = arith.constant 0 : i32
    %0 = arith.cmpi eq, %arg0, %c0_i32 : i32
    %1 = arith.extui %0 : i1 to i32
    %c0_i32_0 = arith.constant 0 : i32
    %2 = arith.cmpi ne, %1, %c0_i32_0 : i32
    scf.if %2 {
      %cst_18 = arith.constant 0.000000e+00 : f32
      %c0_19 = arith.constant 0 : index
      %54 = memref.load %arg4[%c0_19] : memref<1xf32, #tpu.memory_space<smem>>
      memref.store %cst_18, %arg4[%c0_19] : memref<1xf32, #tpu.memory_space<smem>>
    } else {
    }
    %c0 = arith.constant 0 : index
    %c0_1 = arith.constant 0 : index
    %3 = vector.load %arg1[%c0, %c0_1] : memref<8x32xf32, #tpu.memory_space<vmem>>, vector<8x32xf32>
    %cst = arith.constant dense<0xFF800000> : vector<8xf32>
    %4 = vector.multi_reduction <maximumf>, %3, %cst [1] : vector<8x32xf32> to vector<8xf32>
    %5 = vector.shape_cast %4 : vector<8xf32> to vector<8x1xf32>
    %6 = vector.broadcast %5 : vector<8x1xf32> to vector<8x32xf32>
    %7 = arith.subf %3, %6 : vector<8x32xf32>
    %8 = math.exp %7 : vector<8x32xf32>
    %cst_2 = arith.constant dense<0.000000e+00> : vector<8xf32>
    %9 = vector.multi_reduction <add>, %8, %cst_2 [1] : vector<8x32xf32> to vector<8xf32>
    %10 = vector.shape_cast %9 : vector<8xf32> to vector<8x1xf32>
    %11 = math.log %10 : vector<8x1xf32>
    %cst_3 = arith.constant dense<0.000000e+00> : vector<8xf32>
    %12 = vector.multi_reduction <add>, %3, %cst_3 [1] : vector<8x32xf32> to vector<8xf32>
    %13 = vector.shape_cast %12 : vector<8xf32> to vector<8x1xf32>
    %14 = arith.addf %5, %11 : vector<8x1xf32>
    %cst_4 = arith.constant 3.200000e+01 : f32
    %15 = vector.broadcast %cst_4 : f32 to vector<8x1xf32>
    %16 = arith.mulf %15, %14 : vector<8x1xf32>
    %17 = arith.subf %13, %16 : vector<8x1xf32>
    %18 = tpu.iota {dimensions = array<i32: 1>} : vector<8x32xi32>
    %c0_5 = arith.constant 0 : index
    %c0_6 = arith.constant 0 : index
    %19 = vector.load %arg2[%c0_5, %c0_6] : memref<8x1xi32, #tpu.memory_space<vmem>>, vector<8x1xi32>
    %20 = vector.broadcast %19 : vector<8x1xi32> to vector<8x32xi32>
    %21 = arith.cmpi eq, %18, %20 : vector<8x32xi32>
    %cst_7 = arith.constant 0.000000e+00 : f32
    %22 = vector.broadcast %cst_7 : f32 to vector<8x32xf32>
    %23 = arith.select %21, %3, %22 : vector<8x32xi1>, vector<8x32xf32>
    %cst_8 = arith.constant dense<0.000000e+00> : vector<8xf32>
    %24 = vector.multi_reduction <add>, %23, %cst_8 [1] : vector<8x32xf32> to vector<8xf32>
    %25 = vector.shape_cast %24 : vector<8xf32> to vector<8x1xf32>
    %26 = arith.subf %25, %5 : vector<8x1xf32>
    %27 = arith.subf %26, %11 : vector<8x1xf32>
    %cst_9 = arith.constant 0.0032258064 : f32
    %28 = vector.broadcast %cst_9 : f32 to vector<8x1xf32>
    %29 = arith.mulf %28, %17 : vector<8x1xf32>
    %cst_10 = arith.constant 0.899999976 : f32
    %cst_11 = arith.constant 0.0032258064 : f32
    %30 = arith.subf %cst_10, %cst_11 : f32
    %31 = vector.broadcast %30 : f32 to vector<8x1xf32>
    %32 = arith.mulf %31, %27 : vector<8x1xf32>
    %33 = arith.addf %29, %32 : vector<8x1xf32>
    %cst_12 = arith.constant 0.000000e+00 : f32
    %34 = vector.broadcast %cst_12 : f32 to vector<8x1xf32>
    %35 = arith.subf %34, %33 : vector<8x1xf32>
    %36 = tpu.iota {dimensions = array<i32: 0>} : vector<8x1xi32>
    %c8_i32 = arith.constant 8 : i32
    %37 = arith.muli %arg0, %c8_i32 : i32
    %38 = vector.broadcast %37 : i32 to vector<8x1xi32>
    %39 = arith.addi %38, %36 : vector<8x1xi32>
    %c16_i32 = arith.constant 16 : i32
    %40 = vector.broadcast %c16_i32 : i32 to vector<8x1xi32>
    %41 = arith.cmpi slt, %39, %40 : vector<8x1xi32>
    %cst_13 = arith.constant 0.000000e+00 : f32
    %42 = vector.broadcast %cst_13 : f32 to vector<8x1xf32>
    %43 = arith.select %41, %35, %42 : vector<8x1xi1>, vector<8x1xf32>
    %c0_14 = arith.constant 0 : index
    %44 = memref.load %arg4[%c0_14] : memref<1xf32, #tpu.memory_space<smem>>
    %45 = vector.shape_cast %43 : vector<8x1xf32> to vector<1x8x1xf32>
    %cst_15 = arith.constant dense<0.000000e+00> : vector<1xf32>
    %46 = vector.multi_reduction <add>, %45, %cst_15 [1, 2] : vector<1x8x1xf32> to vector<1xf32>
    %47 = vector.shape_cast %46 : vector<1xf32> to vector<1x1x1xf32>
    %48 = vector.extract %47[0, 0, 0] : f32 from vector<1x1x1xf32>
    %49 = arith.addf %44, %48 : f32
    %c0_16 = arith.constant 0 : index
    %50 = memref.load %arg4[%c0_16] : memref<1xf32, #tpu.memory_space<smem>>
    memref.store %49, %arg4[%c0_16] : memref<1xf32, #tpu.memory_space<smem>>
    %c1_i32 = arith.constant 1 : i32
    %51 = arith.cmpi eq, %arg0, %c1_i32 : i32
    %52 = arith.extui %51 : i1 to i32
    %c0_i32_17 = arith.constant 0 : i32
    %53 = arith.cmpi ne, %52, %c0_i32_17 : i32
    scf.if %53 {
      %c0_18 = arith.constant 0 : index
      %54 = memref.load %arg4[%c0_18] : memref<1xf32, #tpu.memory_space<smem>>
      %cst_19 = arith.constant 1.600000e+01 : f32
      %55 = arith.divf %54, %cst_19 : f32
      %cst_20 = arith.constant -0.668481708 : f32
      %56 = arith.addf %cst_20, %55 : f32
      %c0_21 = arith.constant 0 : index
      %c0_22 = arith.constant 0 : index
      %57 = memref.load %arg3[%c0_21, %c0_22] : memref<1x1xf32, #tpu.memory_space<smem>>
      memref.store %56, %arg3[%c0_21, %c0_22] : memref<1x1xf32, #tpu.memory_space<smem>>
    } else {
    }
    return
  }
  func.func @transform_0(%arg0: i32) -> (i32, i32) {
    %c0_i32 = arith.constant 0 : i32
    %c0_i32_0 = arith.constant 0 : i32
    return %arg0, %c0_i32 : i32, i32
  }
  func.func @transform_1(%arg0: i32) -> (i32, i32) {
    %c0_i32 = arith.constant 0 : i32
    %c0_i32_0 = arith.constant 0 : i32
    return %arg0, %c0_i32 : i32, i32
  }
  func.func @transform_2(%arg0: i32) -> (i32, i32) {
    %c0_i32 = arith.constant 0 : i32
    %c0_i32_0 = arith.constant 0 : i32
    %c0_i32_1 = arith.constant 0 : i32
    return %c0_i32, %c0_i32_0 : i32, i32
  }
}

</mosaic_0001>

<llo_original>
// kernel: tpu_custom_call.1
$region0: #{tpu_custom_call.1}
  #allocation0 [shape = 'u32[]', space=smem, size = 0x4, offset = 0x4, fixed_abs, tag = 'smem constant byte address 0x4 - core index']
  #allocation1 [shape = 'u32[144,128]{1,0:T(1,128)}', space=vmem, size = 0x12000, scoped, tag = 'internal scratch']
  #allocation2 [shape = 'f32[1]{0:T(128)}', space=smem, size = 0x200, scoped, tag = 'scratch operand']
  %s0 = inlined_call_operand.vmem [shape: f32[16,32], index: 0, kind: input, shape index: {}]
  %s1 = inlined_call_operand.vmem [shape: s32[16,1], index: 1, kind: input, shape index: {}]
  %s2 = inlined_call_operand.hbm [shape: f32[1,1], index: 2, kind: output, shape index: {}]
  %s3 = sld [smem:[#allocation0]]
  $region49: #{tpu_custom_call.1} parent=0
    _
  %s5 = ssub.s32 1, %s3
  %s6 = scalar_select 0, %s5, %s3
  $region1: #{tpu_custom_call.1} parent=0
    #allocation3 [shape = 'u8[512]{0}', space=smem, size = 0x200, scoped, tag = 'output window, operand 0, single buffered']
    #allocation4 [shape = 's32[2]{0}', space=sflag, size = 0x8, scoped, tag = 'scoped memory for tpu_custom_call.1']
    %7 = vsyncpa [#allocation4], 0
    loop: start=0, step=1, limit=4
    $region2: #{tpu_custom_call.1} parent=1 // loop_pre_header
      _
    $region3: #{tpu_custom_call.1} parent=1 // loop_header
      %s9 = sphi 0, %s13
      %p10 = scmp.ge.s32.totalorder %s9, 4
      %s19 = sphi 0, %s21
      %s22 = sphi 0, %s19
      %s23 = sphi 0, %s22
      %s39 = sphi 0, %s23
      %s45 = sphi 0, %s47
      %s48 = sphi 0, %s45
      %s49 = sphi 0, %s48
      %s65 = sphi 0, %s49
      %s69 = sphi 0, %s69
      %s71 = sphi 0, %s69
      %s72 = sphi 0, %s71
      %s86 = sphi 0, %s72
    $region4: #{tpu_custom_call.1} parent=1 // loop_header_branch
      %12 = sbr.rel (%p10) target = $region8
    $region5: #{tpu_custom_call.1} parent=1 // loop_body
      %s14 = ssub.s32 %s9, 1
      %s15 = ssub.s32 %s9, 2
      %s16 = sadd.s32 %s9, 1
      %s17 = ssub.s32 %s9, %s16
      %p18 = scmp.eq.s32.totalorder %s17, 0
      %s20 = sadd.s32 %s19, 1
      %s21 = scalar_select %p18, %s19, %s20
      %p24 = pneg %p18
      %p25 = scmp.eq.s32.totalorder %s9, 1
      %p26 = por %p24, %p25
      %p27 = scmp.ne.s32.totalorder %s19, %s22
      %p28 = scmp.eq.s32.totalorder %s9, 0
      %p29 = por %p27, %p28
      %p30 = scmp.ne.s32.totalorder %s19, %s22
      %p31 = scmp.eq.s32.totalorder %s14, 1
      %p32 = por %p30, %p31
      %p33 = scmp.ne.s32.totalorder %s22, %s23
      %p34 = scmp.eq.s32.totalorder %s14, 0
      %p35 = por %p33, %p34
      %p36 = scmp.ne.s32.totalorder %s22, %s23
      %p37 = scmp.eq.s32.totalorder %s15, 1
      %p38 = por %p36, %p37
      %p40 = scmp.ne.s32.totalorder %s23, %s39
      %p41 = scmp.eq.s32.totalorder %s15, 0
      %p42 = por %p40, %p41
      %s43 = ssub.s32 %s9, %s16
      %p44 = scmp.eq.s32.totalorder %s43, 0
      %s46 = sadd.s32 %s45, 1
      %s47 = scalar_select %p44, %s45, %s46
      %p50 = pneg %p44
      %p51 = scmp.eq.s32.totalorder %s9, 1
      %p52 = por %p50, %p51
      %p53 = scmp.ne.s32.totalorder %s45, %s48
      %p54 = scmp.eq.s32.totalorder %s9, 0
      %p55 = por %p53, %p54
      %p56 = scmp.ne.s32.totalorder %s45, %s48
      %p57 = scmp.eq.s32.totalorder %s14, 1
      %p58 = por %p56, %p57
      %p59 = scmp.ne.s32.totalorder %s48, %s49
      %p60 = scmp.eq.s32.totalorder %s14, 0
      %p61 = por %p59, %p60
      %p62 = scmp.ne.s32.totalorder %s48, %s49
      %p63 = scmp.eq.s32.totalorder %s15, 1
      %p64 = por %p62, %p63
      %p66 = scmp.ne.s32.totalorder %s49, %s65
      %p67 = scmp.eq.s32.totalorder %s15, 0
      %p68 = por %p66, %p67
      %s70 = sadd.s32 %s69, 1
      %p73 = scmp.eq.s32.totalorder %s9, 1
      %p74 = scmp.ne.s32.totalorder %s69, %s71
      %p75 = scmp.eq.s32.totalorder %s9, 0
      %p76 = por %p74, %p75
      %p77 = scmp.ne.s32.totalorder %s69, %s71
      %p78 = scmp.eq.s32.totalorder %s14, 1
      %p79 = por %p77, %p78
      %p80 = scmp.ne.s32.totalorder %s71, %s72
      %p81 = scmp.eq.s32.totalorder %s14, 0
      %p82 = por %p80, %p81
      %p83 = scmp.ne.s32.totalorder %s71, %s72
      %p84 = scmp.eq.s32.totalorder %s15, 1
      %p85 = por %p83, %p84
      %p87 = scmp.ne.s32.totalorder %s72, %s86
      %p88 = scmp.eq.s32.totalorder %s15, 0
      %p89 = por %p87, %p88
      %p90 = scmp.le.s32.totalorder 1, %s9
      %p91 = scmp.lt.s32.totalorder %s9, 3
      %p92 = pnand %p90, %p91
      %p93 = pneg %p92
      // Predicated region
      $region9: #{tpu_custom_call.1} parent=5 // pred_check
        _
      $region10: #{tpu_custom_call.1} parent=5 // pred_check_branch
        %95 = sbr.rel (%p92) target = $region12
      $region11: #{tpu_custom_call.1} parent=5 // pred_region
        %s96 = ssub.s32 %s9, 1
      $region12: #{tpu_custom_call.1} parent=5 // pred_fallthru
        _
      %p97 = scmp.lt.s32.totalorder %s9, 2
      // Predicated region
      $region13: #{tpu_custom_call.1} parent=5 // pred_check
        %p98 = pneg %p97
      $region14: #{tpu_custom_call.1} parent=5 // pred_check_branch
        %100 = sbr.rel (%p98) target = $region16
      $region15: #{tpu_custom_call.1} parent=5 // pred_region
        // Predicated region
        $region17: #{tpu_custom_call.1} parent=15 // pred_check
          %p101 = pneg %p29
        $region18: #{tpu_custom_call.1} parent=15 // pred_check_branch
          %103 = sbr.rel (%p101) target = $region20
        $region19: #{tpu_custom_call.1} parent=15 // pred_region
          %p104 = scmp.lt.s32.totalorder %s9, 1
          %s105 = scalar_select %p104, %s9, 1
          %s106 = smul.addr %s105, 8
          %s107 = scalar_lea.vmem %s0, %s106
        $region20: #{tpu_custom_call.1} parent=15 // pred_fallthru
          _
        // Predicated region
        $region21: #{tpu_custom_call.1} parent=15 // pred_check
          %p108 = pneg %p55
        $region22: #{tpu_custom_call.1} parent=15 // pred_check_branch
          %110 = sbr.rel (%p108) target = $region24
        $region23: #{tpu_custom_call.1} parent=15 // pred_region
          %p111 = scmp.lt.s32.totalorder %s9, 1
          %s112 = scalar_select %p111, %s9, 1
          %s113 = smul.addr %s112, 8
          %s114 = scalar_lea.vmem %s1, %s113
        $region24: #{tpu_custom_call.1} parent=15 // pred_fallthru
          _
      $region16: #{tpu_custom_call.1} parent=5 // pred_fallthru
        _
      %p115 = scmp.le.s32.totalorder 1, %s9
      %p116 = scmp.lt.s32.totalorder %s9, 3
      %p117 = pnand %p115, %p116
      %p118 = pneg %p117
      // Predicated region
      $region25: #{tpu_custom_call.1} parent=5 // pred_check
        _
      $region26: #{tpu_custom_call.1} parent=5 // pred_check_branch
        %120 = sbr.rel (%p117) target = $region28
      $region27: #{tpu_custom_call.1} parent=5 // pred_region
        %s121 = ssub.s32 %s9, 1
        %p122 = scmp.lt.s32.totalorder %s14, 1
        %s123 = scalar_select %p122, %s14, 1
        %s124 = smul.addr %s123, 8
        %s125 = scalar_lea.vmem %s0, %s124
        %p126 = pneg %p35
        %p127 = pneg %p32
        %p128 = scmp.lt.s32.totalorder %s14, 1
        %s129 = scalar_select %p128, %s14, 1
        %s130 = smul.addr %s129, 8
        %s131 = scalar_lea.vmem %s1, %s130
        %p132 = pneg %p61
        %p133 = pneg %p58
        %p134 = pneg %p82
        %p135 = pneg %p79
        %p136 = scmp.lt.s32.totalorder %s14, 1
        %s137 = scalar_select %p136, %s14, 1
        %s138 = smul.addr %s137, 8
        %s139 = scalar_lea.vmem %s0, %s138
        %p140 = scmp.lt.s32.totalorder %s14, 1
        %s141 = scalar_select %p140, %s14, 1
        %s142 = smul.addr %s141, 8
        %s143 = scalar_lea.vmem %s1, %s142
        %p144 = scmp.eq.s32.totalorder %s14, 0
        // Predicated region
        $region29: #{tpu_custom_call.1} parent=27 // pred_check
          %p145 = pneg %p144
        $region30: #{tpu_custom_call.1} parent=27 // pred_check_branch
          %147 = sbr.rel (%p145) target = $region32
        $region31: #{tpu_custom_call.1} parent=27 // pred_region
          %s148 = scalar_lea.smem [#allocation2], 0
          %149 = sst [smem:[%s148]] 0.0
        $region32: #{tpu_custom_call.1} parent=27 // pred_fallthru
          _
        %v150 = vld [vmem:[%s139] sm:$0xff]
        %vm151 = vcmask 261120
        %v152 = vsel %vm151, %v150, -inf
        %153 = vmax.xlane.f32.xlu0 %v152
        %v154 = vpop.xlane.xlu0 %153
        %v155 = vsub.f32 %v150, %v154
        %v156 = vmul.f32 %v155, 1.442695
        %v157 = vpow.pop %v156
        %v158 = vsel %vm151, %v157, 0.0
        %159 = vadd.xlane.f32.xlu0 %v158
        %v160 = vpop.xlane.xlu0 %159
        %v161 = vlog2.pop %v160
        %v162 = vmul.f32 %v161, 0.6931472
        %v163 = vsel %vm151, %v150, 0.0
        %164 = vadd.xlane.f32.xlu0 %v163
        %v165 = vpop.xlane.xlu0 %164
        %v166 = vadd.f32 %v154, %v162
        %v167 = vmul.f32 %v166, 32.0
        %v168 = vsub.f32 %v165, %v167
        %v169 = vlaneseq
        %v170 = vand.u32 %v169, 127
        %v171 = vld [vmem:[%s143] sm:$0xff]
        %172 = vset.pattern.permute.xlu0 0
        %173 = vperm.xlu0 %172, %v171
        %v174 = vpop.permute.xlu0 %173
        %vm175 = vcmp.eq.s32.totalorder %v170, %v174
        %v176 = vsel %vm175, %v150, 0.0
        %v177 = vsel %vm151, %v176, 0.0
        %178 = vadd.xlane.f32.xlu0 %v177
        %v179 = vpop.xlane.xlu0 %178
        %v180 = vsub.f32 %v179, %v154
        %v181 = vsub.f32 %v180, %v162
        %v182 = vmul.f32 %v168, 0.0032258064
        %v183 = vmul.f32 %v181, 0.8967742
        %v184 = vadd.f32 %v182, %v183
        %v185 = vsub.f32 0.0, %v184
        %v186 = vlaneseq
        %v187 = vshrl.u32 %v186, 7
        %s188 = smul.u32 %s14, 8
        %v189 = vstv %s188
        %v190 = vadd.s32 %v189, %v187
        %vm191 = vcmp.lt.s32.totalorder %v190, 16
        %v192 = vsel %vm191, %v185, 0.0
        %s193 = sld [smem:[#allocation2]]
        %vm194 = vcmask 7168
        %v195 = vsel %vm194, %v192, 0.0
        %196 = vadd.xlane.f32.xlu0 %v195
        %v197 = vpop.xlane.xlu0 %196
        %v198 = vrot.slane %v197, 4
        %v199 = vadd.f32 %v197, %v198
        %v200 = vrot.slane %v199, 2
        %v201 = vadd.f32 %v199, %v200
        %v202 = vrot.slane %v201, 1
        %v203 = vadd.f32 %v201, %v202
        %s204 = vtos %v203
        %s205 = sadd.f32 %s193, %s204
        %s206 = scalar_lea.smem [#allocation2], 0
        %207 = sst [smem:[%s206]] %s205
        %p208 = scmp.eq.s32.totalorder %s14, 1
        // Predicated region
        $region33: #{tpu_custom_call.1} parent=27 // pred_check
          %p209 = pneg %p208
        $region34: #{tpu_custom_call.1} parent=27 // pred_check_branch
          %211 = sbr.rel (%p209) target = $region36
        $region35: #{tpu_custom_call.1} parent=27 // pred_region
          %s212 = sld [smem:[#allocation2]]
          %v213 = vrcp.pop 16.0
          %s214 = vtos %v213
          %s215 = smul.f32 %s212, %s214
          %s216 = sadd.f32 %s215, -0.6684817
          %s217 = scalar_lea.smem [#allocation3], 0
          %218 = sst [smem:[%s217]] %s216
        $region36: #{tpu_custom_call.1} parent=27 // pred_fallthru
          _
        // Predicated region
        $region37: #{tpu_custom_call.1} parent=27 // pred_check
          %p219 = pneg %p79
        $region38: #{tpu_custom_call.1} parent=27 // pred_check_branch
          %221 = sbr.rel (%p219) target = $region40
        $region39: #{tpu_custom_call.1} parent=27 // pred_region
          %s223 = ssub.s32 16, 16
          %224 = vsyncadd [#allocation4], %s223
          %227 = dma.smem_to_hbm [#allocation3], 16, %s2, [#allocation4]
        $region40: #{tpu_custom_call.1} parent=27 // pred_fallthru
          _
        // Predicated region
        $region41: #{tpu_custom_call.1} parent=27 // pred_check
          %p228 = pneg %p79
        $region42: #{tpu_custom_call.1} parent=27 // pred_check_branch
          %230 = sbr.rel (%p228) target = $region44
        $region43: #{tpu_custom_call.1} parent=27 // pred_region
          %231 = dma.done [#allocation4], 16
        $region44: #{tpu_custom_call.1} parent=27 // pred_fallthru
          _
        %232 = sfence
      $region28: #{tpu_custom_call.1} parent=5 // pred_fallthru
        _
      %p233 = scmp.le.s32.totalorder 2, %s9
      // Predicated region
      $region45: #{tpu_custom_call.1} parent=5 // pred_check
        %p234 = pneg %p233
      $region46: #{tpu_custom_call.1} parent=5 // pred_check_branch
        %236 = sbr.rel (%p234) target = $region48
      $region47: #{tpu_custom_call.1} parent=5 // pred_region
        %s237 = ssub.s32 %s9, 2
      $region48: #{tpu_custom_call.1} parent=5 // pred_fallthru
        _
    $region6: #{tpu_custom_call.1} parent=1 // loop_footer
      %s13 = sadd.s32 1, %s9
    $region7: #{tpu_custom_call.1} parent=1 // loop_footer_branch
      %8 = sbr.rel target = $region3
    $region8: #{tpu_custom_call.1} parent=1 // loop_exit
      _
    %238 = vsyncpa [#allocation4], 1
    %s239 = scalar_lea.sflag [#allocation4], 1
    %240 = vsyncpa %s239, 1

</llo_original>
